<compile_context>
chip_gen: v7x
topology: tpu7x:2x2x1
jax: 0.10.0
libtpu: 0.0.40
codegen_flags: <defaults>
</compile_context>

<pallas_src>
import functools

import jax
import jax.numpy as jnp
from jax.experimental import pallas as pl
from jax.experimental.pallas import tpu as pltpu


# --------------------------------------------------------------------------
# Kernels
# --------------------------------------------------------------------------
def _se_fused_kernel(x_ref, w1t_ref, w2t_ref, o_ref, *, inv_hw):
    """Fused single-pass SE on a (bt, C, HW) resident slab."""
    # Squeeze: global average pool over the spatial (lane) axis, f32 accumulate.
    pooled = jnp.sum(x_ref[...], axis=-1, dtype=jnp.float32) * inv_hw        # (bt, C)

    # Excitation: fc1 -> ReLU -> fc2 -> hard-sigmoid (weights pre-transposed).
    h = jnp.maximum(
        jnp.dot(pooled, w1t_ref[...], preferred_element_type=jnp.float32), 0.0)
    y = jnp.dot(h, w2t_ref[...], preferred_element_type=jnp.float32)
    y = jnp.clip(y + 3.0, 0.0, 6.0) * (1.0 / 6.0)                            # (bt, C)

    # Scale: re-read x from VMEM (don't hold the whole slab live across the dots).
    o_ref[...] = (x_ref[...] * y[:, :, None]).astype(o_ref.dtype)


def _se_pool_gate_kernel(x_ref, w1t_ref, w2t_ref, y_ref, *, hw, hw_t, inv_hw):
    """Pass 1 of the fallback: HW-tiled pooled sum + excitation gate per batch row."""
    j = pl.program_id(1)

    @pl.when(j == 0)
    def _():
        y_ref[...] = jnp.zeros_like(y_ref)

    x = x_ref[...]                                                           # (1, C, hw_t)
    lane = jax.lax.broadcasted_iota(jnp.int32, x.shape, dimension=2)
    valid = (j * hw_t + lane) < hw                # mask the (possibly partial) last tile
    xf = jnp.where(valid, x.astype(jnp.float32), 0.0)
    y_ref[...] += jnp.sum(xf, axis=-1, keepdims=True)                        # (1, C, 1)

    @pl.when(j == pl.num_programs(1) - 1)
    def _():
        pooled = y_ref[...][:, :, 0] * inv_hw                                # (1, C)
        h = jnp.maximum(
            jnp.dot(pooled, w1t_ref[...], preferred_element_type=jnp.float32), 0.0)
        g = jnp.dot(h, w2t_ref[...], preferred_element_type=jnp.float32)
        y_ref[...] = (jnp.clip(g + 3.0, 0.0, 6.0) * (1.0 / 6.0))[:, :, None]


def _se_scale_kernel(x_ref, y_ref, o_ref):
    """Pass 2 of the fallback: HW-tiled broadcast scale (fully parallel grid)."""
    o_ref[...] = (x_ref[...] * y_ref[...]).astype(o_ref.dtype)


# --------------------------------------------------------------------------
# Tiling / VMEM heuristics
# --------------------------------------------------------------------------
def _vmem_budgets():
    """Return (per_block_budget_bytes, scoped_vmem_limit_bytes), generation aware."""
    cap = None
    try:
        cap = int(pltpu.get_tpu_info().vmem_capacity_bytes)
    except Exception:
        cap = None
    if cap is None or cap <= (64 << 20):
        # v7x-class (64 MiB physical VMEM) or unknown: stay conservative.
        return 8 << 20, 50 << 20
    # v5e / v6e: 128 MiB physical VMEM -> larger slabs, fewer grid steps.
    return 20 << 20, 100 << 20


def _choose_batch_tile(b, slab_bytes_per_elem, budget_bytes):
    """Largest divisor of b whose slab fits the budget, keeping >= 2 grid steps
    when b >= 2 (so a megacore 'parallel' batch axis shards across TensorCores).
    Returns 0 if even a single element's slab does not fit (-> two-pass path)."""
    best = 0
    for bt in range(1, b + 1):
        if b % bt:
            continue
        if bt * slab_bytes_per_elem > budget_bytes:
            break
        if b == 1 or (b // bt) >= 2:
            best = bt
    return best


def _choose_hw_tile(c, hw, itemsize, budget_bytes):
    """Lane tile (multiple of 128) for the fallback path, sized to the budget."""
    hw_ceil = ((hw + 127) // 128) * 128
    max_lanes = budget_bytes // max(c * itemsize, 1)
    hw_t = max((max_lanes // 128) * 128, 128)
    return int(min(hw_t, hw_ceil))


# --------------------------------------------------------------------------
# pallas_call wrappers
# --------------------------------------------------------------------------
def _se_fused(x_flat, w1t, w2t, bt, vmem_cap):
    b, c, hw = x_flat.shape
    c_red = w1t.shape[1]
    itemsize = x_flat.dtype.itemsize
    inv_hw = 1.0 / float(hw)

    w_bytes = w1t.size * w1t.dtype.itemsize + w2t.size * w2t.dtype.itemsize
    block_bytes = bt * c * hw * itemsize
    vmem_need = 4 * block_bytes + w_bytes + (2 << 20)   # in+out, double-buffered, + slack
    vmem_limit = int(min(max(vmem_need, 32 << 20), vmem_cap))

    flops = 2 * b * c * hw + 2 * (2 * b * c * c_red)    # pool + scale + 2 tiny matmuls
    bytes_accessed = 2 * b * c * hw * itemsize + w_bytes

    return pl.pallas_call(
        functools.partial(_se_fused_kernel, inv_hw=inv_hw),
        out_shape=jax.ShapeDtypeStruct((b, c, hw), x_flat.dtype),
        grid_spec=pltpu.PrefetchScalarGridSpec(
            num_scalar_prefetch=0,
            grid=(b // bt,),
            in_specs=[
                pl.BlockSpec((bt, c, hw), lambda i: (i, 0, 0)),
                pl.BlockSpec((c, c_red), lambda i: (0, 0)),   # full-extent (tiny)
                pl.BlockSpec((c_red, c), lambda i: (0, 0)),   # full-extent (tiny)
            ],
            out_specs=pl.BlockSpec((bt, c, hw), lambda i: (i, 0, 0)),
        ),
        compiler_params=pltpu.CompilerParams(
            dimension_semantics=("parallel",),
            vmem_limit_bytes=vmem_limit,
        ),
        cost_estimate=pl.CostEstimate(
            flops=flops, transcendentals=0, bytes_accessed=bytes_accessed),
    )(x_flat, w1t, w2t)


def _se_two_pass(x_flat, w1t, w2t, hw_t, vmem_cap):
    b, c, hw = x_flat.shape
    c_red = w1t.shape[1]
    itemsize = x_flat.dtype.itemsize
    n_hw = pl.cdiv(hw, hw_t)
    inv_hw = 1.0 / float(hw)

    w_bytes = w1t.size * w1t.dtype.itemsize + w2t.size * w2t.dtype.itemsize
    blk_bytes = c * hw_t * itemsize
    vmem_need = 4 * blk_bytes + w_bytes + 4 * c * 4 + (2 << 20)
    vmem_limit = int(min(max(vmem_need, 32 << 20), vmem_cap))

    # Pass 1: pooled-sum accumulator over HW tiles + excitation gate (f32).
    gate = pl.pallas_call(
        functools.partial(_se_pool_gate_kernel, hw=hw, hw_t=hw_t, inv_hw=inv_hw),
        out_shape=jax.ShapeDtypeStruct((b, c, 1), jnp.float32),
        grid_spec=pltpu.PrefetchScalarGridSpec(
            num_scalar_prefetch=0,
            grid=(b, n_hw),
            in_specs=[
                pl.BlockSpec((1, c, hw_t), lambda i, j: (i, 0, j)),
                pl.BlockSpec((c, c_red), lambda i, j: (0, 0)),
                pl.BlockSpec((c_red, c), lambda i, j: (0, 0)),
            ],
            out_specs=pl.BlockSpec((1, c, 1), lambda i, j: (i, 0, 0)),
        ),
        compiler_params=pltpu.CompilerParams(
            dimension_semantics=("parallel", "arbitrary"),
            vmem_limit_bytes=vmem_limit,
        ),
        cost_estimate=pl.CostEstimate(
            flops=b * c * hw + 4 * b * c * c_red,
            transcendentals=0,
            bytes_accessed=b * c * hw * itemsize + w_bytes + b * c * 4),
    )(x_flat, w1t, w2t)

    # Pass 2: fully parallel HW-tiled broadcast scale (both TCs busy even at B=1).
    out = pl.pallas_call(
        _se_scale_kernel,
        out_shape=jax.ShapeDtypeStruct((b, c, hw), x_flat.dtype),
        grid_spec=pltpu.PrefetchScalarGridSpec(
            num_scalar_prefetch=0,
            grid=(b, n_hw),
            in_specs=[
                pl.BlockSpec((1, c, hw_t), lambda i, j: (i, 0, j)),
                pl.BlockSpec((1, c, 1), lambda i, j: (i, 0, 0)),
            ],
            out_specs=pl.BlockSpec((1, c, hw_t), lambda i, j: (i, 0, j)),
        ),
        compiler_params=pltpu.CompilerParams(
            dimension_semantics=("parallel", "parallel"),
            vmem_limit_bytes=vmem_limit,
        ),
        cost_estimate=pl.CostEstimate(
            flops=b * c * hw,
            transcendentals=0,
            bytes_accessed=2 * b * c * hw * itemsize + b * c * 4),
    )(x_flat, gate)
    return out


def se_module(x, w1, w2, *, force_two_pass=False, hw_tile=None):
    """SE forward.  x: (B, C, H, W); w1: (C//r, C); w2: (C, C//r) (PyTorch Linear layout,
    bias=False as in the reference module)."""
    b, c, h, w = x.shape
    hw = h * w
    itemsize = x.dtype.itemsize

    # Pre-transpose the (tiny) weights at trace time so both in-kernel dots use the
    # natural lhs-dim-1 x rhs-dim-0 contraction (no per-step weight shuffles).
    w1t = w1.T                      # (C, C_red)
    w2t = w2.T                      # (C_red, C)

    # No padding / unpadding: reshape is free (contiguous), blocks use full (C, HW).
    x_flat = x.reshape(b, c, hw)

    block_budget, vmem_cap = _vmem_budgets()
    bt = _choose_batch_tile(b, c * hw * itemsize, block_budget)

    use_two_pass = (
        force_two_pass
        or bt == 0                                                   # slab too big for VMEM budget
        or (b == 1 and hw >= 256 and c * hw * itemsize >= (1 << 20))  # batch-1: give both TCs work
    )

    if use_two_pass:
        hw_t = hw_tile if hw_tile is not None else _choose_hw_tile(c, hw, itemsize, block_budget)
        out_flat = _se_two_pass(x_flat, w1t, w2t, hw_t, vmem_cap)
    else:
        out_flat = _se_fused(x_flat, w1t, w2t, bt, vmem_cap)

    return out_flat.reshape(b, c, h, w)


def se_module_ref(x, w1, w2):
    """Pure-JAX reference matching the PyTorch forward."""
    xf = x.astype(jnp.float32)
    pooled = jnp.mean(xf, axis=(2, 3))                               # (B, C)
    h = jnp.maximum(pooled @ w1.T.astype(jnp.float32), 0.0)
    y = jnp.clip(h @ w2.T.astype(jnp.float32) + 3.0, 0.0, 6.0) / 6.0
    return (xf * y[:, :, None, None]).astype(x.dtype)


# --------------------------------------------------------------------------
# Self-test
# --------------------------------------------------------------------------
if __name__ == "__main__":
    def make_inputs(k, b, c, hh, ww, reduction, dtype):
        kx, k1, k2 = jax.random.split(k, 3)
        c_red = max(c // reduction, 1)
        x = jax.random.normal(kx, (b, c, hh, ww), dtype=jnp.float32).astype(dtype)
        # PyTorch Linear weight layout: (out_features, in_features), bias=False.
        w1 = (jax.random.normal(k1, (c_red, c), dtype=jnp.float32) * 0.1).astype(dtype)
        w2 = (jax.random.normal(k2, (c, c_red), dtype=jnp.float32) * 0.1).astype(dtype)
        return x, w1, w2

    key = jax.random.PRNGKey(0)
    ka, kb, kc = jax.random.split(key, 3)

    # 1) Primary case (fused single-pass path): B=2, C=4, H=W=16, reduction=4.
    x, w1, w2 = make_inputs(ka, 2, 4, 16, 16, 4, jnp.float32)
    out = jax.block_until_ready(jax.jit(se_module)(x, w1, w2))
    ref = se_module_ref(x, w1, w2)
    assert out.shape == x.shape
    assert jnp.allclose(out, ref, atol=1e-5, rtol=1e-5), "fused f32 mismatch"

    # 2) Two-pass fallback (gate + HW-tiled scale), forced at small shapes.
    x, w1, w2 = make_inputs(kb, 1, 8, 16, 16, 4, jnp.float32)
    two_pass_fn = jax.jit(functools.partial(se_module, force_two_pass=True, hw_tile=128))
    out = jax.block_until_ready(two_pass_fn(x, w1, w2))
    ref = se_module_ref(x, w1, w2)
    assert jnp.allclose(out, ref, atol=1e-5, rtol=1e-5), "two-pass f32 mismatch"

    # 3) bf16 inputs on the fused path (pool/excite still accumulate in f32).
    x, w1, w2 = make_inputs(kc, 2, 8, 8, 8, 4, jnp.bfloat16)
    out = jax.block_until_ready(jax.jit(se_module)(x, w1, w2))
    ref = se_module_ref(x, w1, w2)
    assert jnp.allclose(out.astype(jnp.float32), ref.astype(jnp.float32),
                        atol=2e-2, rtol=2e-2), "fused bf16 mismatch"

    print("KERNEL_OK")
</pallas_src>

<mosaic_0001>
module attributes {stable_mosaic.version = 11 : i64} {
  func.func @_se_fused_kernel(%arg0: i32, %arg1: memref<1x4x256xf32, #tpu.memory_space<vmem>>, %arg2: memref<4x1xf32, #tpu.memory_space<vmem>>, %arg3: memref<1x4xf32, #tpu.memory_space<vmem>>, %arg4: memref<1x4x256xf32, #tpu.memory_space<vmem>>) attributes {dimension_semantics = [#tpu.dimension_semantics<parallel>], iteration_bounds = array<i64: 2>, scalar_prefetch = 0 : i64, scratch_operands = 0 : i64, tpu.core_type = #tpu.core_type<tc>, window_params = [{transform_indices = @transform_0, window_bounds = array<i64: 1, 4, 256>}, {pipeline_mode = #tpu.pipeline_mode<synchronous>, transform_indices = @transform_1, window_bounds = array<i64: 4, 1>}, {pipeline_mode = #tpu.pipeline_mode<synchronous>, transform_indices = @transform_2, window_bounds = array<i64: 1, 4>}, {transform_indices = @transform_3, window_bounds = array<i64: 1, 4, 256>}]} {
    %c0 = arith.constant 0 : index
    %c0_0 = arith.constant 0 : index
    %c0_1 = arith.constant 0 : index
    %0 = vector.load %arg1[%c0, %c0_0, %c0_1] : memref<1x4x256xf32, #tpu.memory_space<vmem>>, vector<1x4x256xf32>
    %cst = arith.constant dense<0.000000e+00> : vector<1x4xf32>
    %1 = vector.multi_reduction <add>, %0, %cst [2] : vector<1x4x256xf32> to vector<1x4xf32>
    %cst_2 = arith.constant 3.906250e-03 : f32
    %2 = vector.broadcast %cst_2 : f32 to vector<1x4xf32>
    %3 = arith.mulf %1, %2 : vector<1x4xf32>
    %c0_3 = arith.constant 0 : index
    %c0_4 = arith.constant 0 : index
    %4 = vector.load %arg2[%c0_3, %c0_4] : memref<4x1xf32, #tpu.memory_space<vmem>>, vector<4x1xf32>
    %cst_5 = arith.constant dense<0.000000e+00> : vector<1x1xf32>
    %5 = tpu.matmul %3, %4, %cst_5 {dimension_numbers = #tpu.dot_dimension_numbers<[1], [0], [0], [1], [0, 0, 1, 1], [], []>} : vector<1x4xf32>, vector<4x1xf32>, vector<1x1xf32> -> vector<1x1xf32>
    %cst_6 = arith.constant 0.000000e+00 : f32
    %6 = vector.broadcast %cst_6 : f32 to vector<1x1xf32>
    %7 = arith.maximumf %5, %6 : vector<1x1xf32>
    %c0_7 = arith.constant 0 : index
    %c0_8 = arith.constant 0 : index
    %8 = vector.load %arg3[%c0_7, %c0_8] : memref<1x4xf32, #tpu.memory_space<vmem>>, vector<1x4xf32>
    %cst_9 = arith.constant dense<0.000000e+00> : vector<1x4xf32>
    %9 = tpu.matmul %7, %8, %cst_9 {dimension_numbers = #tpu.dot_dimension_numbers<[1], [0], [0], [1], [0, 0, 1, 1], [], []>} : vector<1x1xf32>, vector<1x4xf32>, vector<1x4xf32> -> vector<1x4xf32>
    %cst_10 = arith.constant 3.000000e+00 : f32
    %10 = vector.broadcast %cst_10 : f32 to vector<1x4xf32>
    %11 = arith.addf %9, %10 : vector<1x4xf32>
    %cst_11 = arith.constant 0.000000e+00 : f32
    %cst_12 = arith.constant 6.000000e+00 : f32
    %12 = vector.broadcast %cst_11 : f32 to vector<1x4xf32>
    %13 = arith.maximumf %12, %11 : vector<1x4xf32>
    %14 = vector.broadcast %cst_12 : f32 to vector<1x4xf32>
    %15 = arith.minimumf %14, %13 : vector<1x4xf32>
    %cst_13 = arith.constant 0.166666672 : f32
    %16 = vector.broadcast %cst_13 : f32 to vector<1x4xf32>
    %17 = arith.mulf %15, %16 : vector<1x4xf32>
    %c0_14 = arith.constant 0 : index
    %c0_15 = arith.constant 0 : index
    %c0_16 = arith.constant 0 : index
    %18 = vector.load %arg1[%c0_14, %c0_15, %c0_16] : memref<1x4x256xf32, #tpu.memory_space<vmem>>, vector<1x4x256xf32>
    %19 = vector.shape_cast %17 : vector<1x4xf32> to vector<1x4x1xf32>
    %20 = vector.broadcast %19 : vector<1x4x1xf32> to vector<1x4x256xf32>
    %21 = arith.mulf %18, %20 : vector<1x4x256xf32>
    %c0_17 = arith.constant 0 : index
    %c0_18 = arith.constant 0 : index
    %c0_19 = arith.constant 0 : index
    %22 = vector.load %arg4[%c0_17, %c0_18, %c0_19] : memref<1x4x256xf32, #tpu.memory_space<vmem>>, vector<1x4x256xf32>
    tpu.vector_store %arg4[%c0_17, %c0_18, %c0_19], %21 {strides = array<i32>} : memref<1x4x256xf32, #tpu.memory_space<vmem>>, vector<1x4x256xf32>,
    return
  }
  func.func @transform_0(%arg0: i32) -> (i32, i32, i32) {
    %c0_i32 = arith.constant 0 : i32
    %c0_i32_0 = arith.constant 0 : i32
    %c0_i32_1 = arith.constant 0 : i32
    return %arg0, %c0_i32, %c0_i32_0 : i32, i32, i32
  }
  func.func @transform_1(%arg0: i32) -> (i32, i32) {
    %c0_i32 = arith.constant 0 : i32
    %c0_i32_0 = arith.constant 0 : i32
    %c0_i32_1 = arith.constant 0 : i32
    return %c0_i32, %c0_i32_0 : i32, i32
  }
  func.func @transform_2(%arg0: i32) -> (i32, i32) {
    %c0_i32 = arith.constant 0 : i32
    %c0_i32_0 = arith.constant 0 : i32
    %c0_i32_1 = arith.constant 0 : i32
    return %c0_i32, %c0_i32_0 : i32, i32
  }
  func.func @transform_3(%arg0: i32) -> (i32, i32, i32) {
    %c0_i32 = arith.constant 0 : i32
    %c0_i32_0 = arith.constant 0 : i32
    %c0_i32_1 = arith.constant 0 : i32
    return %arg0, %c0_i32, %c0_i32_0 : i32, i32, i32
  }
}

</mosaic_0001>

<llo_original>
// kernel: se_module.1
$region0: #{se_module.1}
  #allocation0 [shape = 'u32[]', space=smem, size = 0x4, offset = 0x4, fixed_abs, tag = 'smem constant byte address 0x4 - core index']
  #allocation1 [shape = 'u32[144,128]{1,0:T(1,128)}', space=vmem, size = 0x12000, scoped, tag = 'internal scratch']
  %s0 = inlined_call_operand.vmem [shape: f32[2,4,256], index: 0, kind: input, shape index: {}]
  %s1 = inlined_call_operand.vmem [shape: f32[4,1], index: 1, kind: input, shape index: {}]
  %s2 = inlined_call_operand.vmem [shape: f32[1,4], index: 2, kind: input, shape index: {}]
  %s3 = inlined_call_operand.vmem [shape: f32[2,4,256], index: 3, kind: output, shape index: {}]
  %s4 = sld [smem:[#allocation0]]
  $region45: #{se_module.1} parent=0
    _
  %s6 = ssub.s32 1, %s4
  %s7 = scalar_select 0, %s6, %s4
  loop: start=0, step=1, limit=4
  $region2: #{se_module.1} parent=0 // loop_pre_header
    _
  $region3: #{se_module.1} parent=0 // loop_header
    %s9 = sphi 0, %s13
    %p10 = scmp.ge.s32.totalorder %s9, 4
    %s19 = sphi 0, %s21
    %s22 = sphi 0, %s19
    %s23 = sphi 0, %s22
    %s39 = sphi 0, %s23
    %s43 = sphi 0, %s43
    %s45 = sphi 0, %s43
    %s46 = sphi 0, %s45
    %s60 = sphi 0, %s46
    %s64 = sphi 0, %s64
    %s66 = sphi 0, %s64
    %s67 = sphi 0, %s66
    %s81 = sphi 0, %s67
    %s87 = sphi 0, %s89
    %s90 = sphi 0, %s87
    %s91 = sphi 0, %s90
    %s107 = sphi 0, %s91
  $region4: #{se_module.1} parent=0 // loop_header_branch
    %12 = sbr.rel (%p10) target = $region8
  $region5: #{se_module.1} parent=0 // loop_body
    %s14 = ssub.s32 %s9, 1
    %s15 = ssub.s32 %s9, 2
    %s16 = sadd.s32 %s9, 1
    %s17 = ssub.s32 %s9, %s16
    %p18 = scmp.eq.s32.totalorder %s17, 0
    %s20 = sadd.s32 %s19, 1
    %s21 = scalar_select %p18, %s19, %s20
    %p24 = pneg %p18
    %p25 = scmp.eq.s32.totalorder %s9, 1
    %p26 = por %p24, %p25
    %p27 = scmp.ne.s32.totalorder %s19, %s22
    %p28 = scmp.eq.s32.totalorder %s9, 0
    %p29 = por %p27, %p28
    %p30 = scmp.ne.s32.totalorder %s19, %s22
    %p31 = scmp.eq.s32.totalorder %s14, 1
    %p32 = por %p30, %p31
    %p33 = scmp.ne.s32.totalorder %s22, %s23
    %p34 = scmp.eq.s32.totalorder %s14, 0
    %p35 = por %p33, %p34
    %p36 = scmp.ne.s32.totalorder %s22, %s23
    %p37 = scmp.eq.s32.totalorder %s15, 1
    %p38 = por %p36, %p37
    %p40 = scmp.ne.s32.totalorder %s23, %s39
    %p41 = scmp.eq.s32.totalorder %s15, 0
    %p42 = por %p40, %p41
    %s44 = sadd.s32 %s43, 1
    %p47 = scmp.eq.s32.totalorder %s9, 1
    %p48 = scmp.ne.s32.totalorder %s43, %s45
    %p49 = scmp.eq.s32.totalorder %s9, 0
    %p50 = por %p48, %p49
    %p51 = scmp.ne.s32.totalorder %s43, %s45
    %p52 = scmp.eq.s32.totalorder %s14, 1
    %p53 = por %p51, %p52
    %p54 = scmp.ne.s32.totalorder %s45, %s46
    %p55 = scmp.eq.s32.totalorder %s14, 0
    %p56 = por %p54, %p55
    %p57 = scmp.ne.s32.totalorder %s45, %s46
    %p58 = scmp.eq.s32.totalorder %s15, 1
    %p59 = por %p57, %p58
    %p61 = scmp.ne.s32.totalorder %s46, %s60
    %p62 = scmp.eq.s32.totalorder %s15, 0
    %p63 = por %p61, %p62
    %s65 = sadd.s32 %s64, 1
    %p68 = scmp.eq.s32.totalorder %s9, 1
    %p69 = scmp.ne.s32.totalorder %s64, %s66
    %p70 = scmp.eq.s32.totalorder %s9, 0
    %p71 = por %p69, %p70
    %p72 = scmp.ne.s32.totalorder %s64, %s66
    %p73 = scmp.eq.s32.totalorder %s14, 1
    %p74 = por %p72, %p73
    %p75 = scmp.ne.s32.totalorder %s66, %s67
    %p76 = scmp.eq.s32.totalorder %s14, 0
    %p77 = por %p75, %p76
    %p78 = scmp.ne.s32.totalorder %s66, %s67
    %p79 = scmp.eq.s32.totalorder %s15, 1
    %p80 = por %p78, %p79
    %p82 = scmp.ne.s32.totalorder %s67, %s81
    %p83 = scmp.eq.s32.totalorder %s15, 0
    %p84 = por %p82, %p83
    %s85 = ssub.s32 %s9, %s16
    %p86 = scmp.eq.s32.totalorder %s85, 0
    %s88 = sadd.s32 %s87, 1
    %s89 = scalar_select %p86, %s87, %s88
    %p92 = pneg %p86
    %p93 = scmp.eq.s32.totalorder %s9, 1
    %p94 = por %p92, %p93
    %p95 = scmp.ne.s32.totalorder %s87, %s90
    %p96 = scmp.eq.s32.totalorder %s9, 0
    %p97 = por %p95, %p96
    %p98 = scmp.ne.s32.totalorder %s87, %s90
    %p99 = scmp.eq.s32.totalorder %s14, 1
    %p100 = por %p98, %p99
    %p101 = scmp.ne.s32.totalorder %s90, %s91
    %p102 = scmp.eq.s32.totalorder %s14, 0
    %p103 = por %p101, %p102
    %p104 = scmp.ne.s32.totalorder %s90, %s91
    %p105 = scmp.eq.s32.totalorder %s15, 1
    %p106 = por %p104, %p105
    %p108 = scmp.ne.s32.totalorder %s91, %s107
    %p109 = scmp.eq.s32.totalorder %s15, 0
    %p110 = por %p108, %p109
    %p111 = scmp.le.s32.totalorder 1, %s9
    %p112 = scmp.lt.s32.totalorder %s9, 3
    %p113 = pnand %p111, %p112
    %p114 = pneg %p113
    // Predicated region
    $region9: #{se_module.1} parent=5 // pred_check
      _
    $region10: #{se_module.1} parent=5 // pred_check_branch
      %116 = sbr.rel (%p113) target = $region12
    $region11: #{se_module.1} parent=5 // pred_region
      %s117 = ssub.s32 %s9, 1
      // Predicated region
      $region13: #{se_module.1} parent=11 // pred_check
        %p118 = pneg %p56
      $region14: #{se_module.1} parent=11 // pred_check_branch
        %120 = sbr.rel (%p118) target = $region16
      $region15: #{se_module.1} parent=11 // pred_region
        _
      $region16: #{se_module.1} parent=11 // pred_fallthru
        _
      // Predicated region
      $region17: #{se_module.1} parent=11 // pred_check
        %p121 = pneg %p77
      $region18: #{se_module.1} parent=11 // pred_check_branch
        %123 = sbr.rel (%p121) target = $region20
      $region19: #{se_module.1} parent=11 // pred_region
        _
      $region20: #{se_module.1} parent=11 // pred_fallthru
        _
    $region12: #{se_module.1} parent=5 // pred_fallthru
      _
    %p124 = scmp.lt.s32.totalorder %s9, 2
    // Predicated region
    $region21: #{se_module.1} parent=5 // pred_check
      %p125 = pneg %p124
    $region22: #{se_module.1} parent=5 // pred_check_branch
      %127 = sbr.rel (%p125) target = $region24
    $region23: #{se_module.1} parent=5 // pred_region
      // Predicated region
      $region25: #{se_module.1} parent=23 // pred_check
        %p128 = pneg %p29
      $region26: #{se_module.1} parent=23 // pred_check_branch
        %130 = sbr.rel (%p128) target = $region28
      $region27: #{se_module.1} parent=23 // pred_region
        %p131 = scmp.lt.s32.totalorder %s9, 1
        %s132 = scalar_select %p131, %s9, 1
        %s133 = smul.addr %s132, 2
        %s134 = smul.addr %s133, 4
        %s135 = scalar_lea.vmem %s0, %s134
      $region28: #{se_module.1} parent=23 // pred_fallthru
        _
    $region24: #{se_module.1} parent=5 // pred_fallthru
      _
    %p136 = scmp.le.s32.totalorder 1, %s9
    %p137 = scmp.lt.s32.totalorder %s9, 3
    %p138 = pnand %p136, %p137
    %p139 = pneg %p138
    // Predicated region
    $region29: #{se_module.1} parent=5 // pred_check
      _
    $region30: #{se_module.1} parent=5 // pred_check_branch
      %141 = sbr.rel (%p138) target = $region32
    $region31: #{se_module.1} parent=5 // pred_region
      %s142 = ssub.s32 %s9, 1
      %p143 = scmp.lt.s32.totalorder %s14, 1
      %s144 = scalar_select %p143, %s14, 1
      %s145 = smul.addr %s144, 2
      %s146 = smul.addr %s145, 4
      %s147 = scalar_lea.vmem %s0, %s146
      %p148 = pneg %p35
      %p149 = pneg %p32
      %p150 = pneg %p56
      %p151 = pneg %p53
      %p152 = pneg %p77
      %p153 = pneg %p74
      %p154 = pneg %p103
      %p155 = pneg %p100
      %p156 = scmp.lt.s32.totalorder %s14, 1
      %s157 = scalar_select %p156, %s14, 1
      %s158 = smul.addr %s157, 2
      %s159 = smul.addr %s158, 4
      %s160 = scalar_lea.vmem %s3, %s159
      %p161 = scmp.lt.s32.totalorder %s14, 1
      %s162 = scalar_select %p161, %s14, 1
      %s163 = smul.addr %s162, 2
      %s164 = smul.addr %s163, 4
      %s165 = scalar_lea.vmem %s0, %s164
      %p166 = scmp.lt.s32.totalorder %s14, 1
      %s167 = scalar_select %p166, %s14, 1
      %s168 = smul.addr %s167, 2
      %s169 = smul.addr %s168, 4
      %s170 = scalar_lea.vmem %s3, %s169
      %v171 = vld [vmem:[%s165] sm:$0xff]
      %v173 = vcombine.high %v171, %v171
      %vm175 = vcmask 1043456
      %v176 = vsel %vm175, %v171, 0.0
      %v177 = vsel %vm175, %v173, 0.0
      %v178 = vadd.f32 %v176, %v177
      %179 = vadd.xlane.f32.xlu0 %v178
      %v180 = vpop.xlane.xlu0 %179
      %v181 = vmul.f32 %v180, 0.00390625
      %v182 = vld [vmem:[%s1] sm:$0xf]
      %v184 = vlaneseq
      %v185 = vand.u32 %v184, 127
      %v186 = vlaneseq
      %v187 = vshrl.u32 %v186, 7
      %v188 = vsub.s32 %v185, %v187
      %v189 = vrot.slane %v181, %v188
      %vm190 = vcmask 31744
      %v191 = vsel %vm190, %v189, 0
      %v194 = vsel %vm175, %v182, 0
      %196 = vmatprep.subr.mxu0 0.0
      %197 = vmatpush1.msra.mxu0 %v194
      %198 = vmatprep.subr.mxu0 0.0
      %199 = vmatpush1.msra.mxu0 0.0
      %200 = vmatprep.subr.mxu0 0.0
      %201 = vmatpush1.msra.mxu0 0.0
      %202 = vmatprep.subr.mxu0 0.0
      %203 = vmatpush1.msra.mxu0 0.0
      %204 = vmatprep.subr.mxu0 0.0
      %205 = vmatpush1.msra.mxu0 0.0
      %206 = vmatprep.subr.mxu0 0.0
      %207 = vmatpush1.msra.mxu0 0.0
      %208 = vmatprep.subr.mxu0 0.0
      %209 = vmatpush1.msra.mxu0 0.0
      %210 = vmatprep.subr.mxu0 0.0
      %211 = vmatpush1.msra.mxu0 0.0
      %212 = vmatprep.subr.mxu0 0.0
      %213 = vmatpush1.msra.mxu0 0.0
      %214 = vmatprep.subr.mxu0 0.0
      %215 = vmatpush1.msra.mxu0 0.0
      %216 = vmatprep.subr.mxu0 0.0
      %217 = vmatpush1.msra.mxu0 0.0
      %218 = vmatprep.subr.mxu0 0.0
      %219 = vmatpush1.msra.mxu0 0.0
      %220 = vmatprep.subr.mxu0 0.0
      %221 = vmatpush1.msra.mxu0 0.0
      %222 = vmatprep.subr.mxu0 0.0
      %223 = vmatpush1.msra.mxu0 0.0
      %224 = vmatprep.subr.mxu0 0.0
      %225 = vmatpush1.msra.mxu0 0.0
      %226 = vmatprep.subr.mxu0 0.0
      %227 = vmatpush1.msra.mxu0 0.0
      %228 = vmatprep.subr.mxu0 0.0
      %229 = vmatpush1.msra.mxu0 0.0
      %230 = vmatprep.subr.mxu0 0.0
      %231 = vmatpush1.msra.mxu0 0.0
      %232 = vmatprep.subr.mxu0 0.0
      %233 = vmatpush1.msra.mxu0 0.0
      %234 = vmatprep.subr.mxu0 0.0
      %235 = vmatpush1.msra.mxu0 0.0
      %236 = vmatprep.subr.mxu0 0.0
      %237 = vmatpush1.msra.mxu0 0.0
      %238 = vmatprep.subr.mxu0 0.0
      %239 = vmatpush1.msra.mxu0 0.0
      %240 = vmatprep.subr.mxu0 0.0
      %241 = vmatpush1.msra.mxu0 0.0
      %242 = vmatprep.subr.mxu0 0.0
      %243 = vmatpush1.msra.mxu0 0.0
      %244 = vmatprep.subr.mxu0 0.0
      %245 = vmatpush1.msra.mxu0 0.0
      %246 = vmatprep.subr.mxu0 0.0
      %247 = vmatpush1.msra.mxu0 0.0
      %248 = vmatprep.subr.mxu0 0.0
      %249 = vmatpush1.msra.mxu0 0.0
      %250 = vmatprep.subr.mxu0 0.0
      %251 = vmatpush1.msra.mxu0 0.0
      %252 = vmatprep.subr.mxu0 0.0
      %253 = vmatpush1.msra.mxu0 0.0
      %254 = vmatprep.subr.mxu0 0.0
      %255 = vmatpush1.msra.mxu0 0.0
      %256 = vmatprep.subr.mxu0 0.0
      %257 = vmatpush1.msra.mxu0 0.0
      %258 = vmatprep.subr.mxu0 0.0
      %259 = vmatpush1.msra.mxu0 0.0
      %260 = vmatprep.mubr.f32.mxu0 0.0
      %261 = vmatmul.mubr.f32.gmra.mrb[0].mxu0 %v191
      %v262 = vpop.f32.mrb[0].mxu0
      %v263 = vadd.f32 0.0, %v262
      %v264 = vpop.f32.mrb[0].mxu0
      %265 = vdwg.mxu0
      %v266 = vmax.f32 %v263, 0.0
      %v267 = vld [vmem:[%s2] sm:$0x1]
      %vm268 = vcmask 7168
      %v270 = vsel %vm268, %v266, 0
      %vm272 = vcmask 1040384
      %v274 = vsel %vm272, %v267, 0
      %276 = vmatprep.subr.mxu0 0.0
      %277 = vmatpush1.msra.mxu0 %v274
      %278 = vmatprep.subr.mxu0 0.0
      %279 = vmatpush1.msra.mxu0 0.0
      %280 = vmatprep.subr.mxu0 0.0
      %281 = vmatpush1.msra.mxu0 0.0
      %282 = vmatprep.subr.mxu0 0.0
      %283 = vmatpush1.msra.mxu0 0.0
      %284 = vmatprep.subr.mxu0 0.0
      %285 = vmatpush1.msra.mxu0 0.0
      %286 = vmatprep.subr.mxu0 0.0
      %287 = vmatpush1.msra.mxu0 0.0
      %288 = vmatprep.subr.mxu0 0.0
      %289 = vmatpush1.msra.mxu0 0.0
      %290 = vmatprep.subr.mxu0 0.0
      %291 = vmatpush1.msra.mxu0 0.0
      %292 = vmatprep.subr.mxu0 0.0
      %293 = vmatpush1.msra.mxu0 0.0
      %294 = vmatprep.subr.mxu0 0.0
      %295 = vmatpush1.msra.mxu0 0.0
      %296 = vmatprep.subr.mxu0 0.0
      %297 = vmatpush1.msra.mxu0 0.0
      %298 = vmatprep.subr.mxu0 0.0
      %299 = vmatpush1.msra.mxu0 0.0
      %300 = vmatprep.subr.mxu0 0.0
      %301 = vmatpush1.msra.mxu0 0.0
      %302 = vmatprep.subr.mxu0 0.0
      %303 = vmatpush1.msra.mxu0 0.0
      %304 = vmatprep.subr.mxu0 0.0
      %305 = vmatpush1.msra.mxu0 0.0
      %306 = vmatprep.subr.mxu0 0.0
      %307 = vmatpush1.msra.mxu0 0.0
      %308 = vmatprep.subr.mxu0 0.0
      %309 = vmatpush1.msra.mxu0 0.0
      %310 = vmatprep.subr.mxu0 0.0
      %311 = vmatpush1.msra.mxu0 0.0
      %312 = vmatprep.subr.mxu0 0.0
      %313 = vmatpush1.msra.mxu0 0.0
      %314 = vmatprep.subr.mxu0 0.0
      %315 = vmatpush1.msra.mxu0 0.0
      %316 = vmatprep.subr.mxu0 0.0
      %317 = vmatpush1.msra.mxu0 0.0
      %318 = vmatprep.subr.mxu0 0.0
      %319 = vmatpush1.msra.mxu0 0.0
      %320 = vmatprep.subr.mxu0 0.0
      %321 = vmatpush1.msra.mxu0 0.0
      %322 = vmatprep.subr.mxu0 0.0
      %323 = vmatpush1.msra.mxu0 0.0
      %324 = vmatprep.subr.mxu0 0.0
      %325 = vmatpush1.msra.mxu0 0.0
      %326 = vmatprep.subr.mxu0 0.0
      %327 = vmatpush1.msra.mxu0 0.0
      %328 = vmatprep.subr.mxu0 0.0
      %329 = vmatpush1.msra.mxu0 0.0
      %330 = vmatprep.subr.mxu0 0.0
      %331 = vmatpush1.msra.mxu0 0.0
      %332 = vmatprep.subr.mxu0 0.0
      %333 = vmatpush1.msra.mxu0 0.0
      %334 = vmatprep.subr.mxu0 0.0
      %335 = vmatpush1.msra.mxu0 0.0
      %336 = vmatprep.subr.mxu0 0.0
      %337 = vmatpush1.msra.mxu0 0.0
      %338 = vmatprep.subr.mxu0 0.0
      %339 = vmatpush1.msra.mxu0 0.0
      %340 = vmatprep.mubr.f32.mxu0 0.0
      %341 = vmatmul.mubr.f32.gmra.mrb[0].mxu0 %v270
      %v342 = vpop.f32.mrb[0].mxu0
      %v343 = vadd.f32 3.0, %v342
      %v344 = vpop.f32.mrb[0].mxu0
      %345 = vdwg.mxu0
      %v346 = vmax.f32 %v343, 0.0
      %v347 = vmin.f32 %v346, 6.0
      %v348 = vmul.f32 %v347, 0.16666667
      %v349 = vlaneseq
      %v350 = vshrl.u32 %v349, 7
      %v351 = vsub.s32 0, %v350
      %v352 = vrot.slane %v348, %v351
      %354 = vbcast.lane.b32.xlu0 %v352, 256
      %v355 = vpop.permute.xlu0 %354
      %v358 = vunpack.c.l.s4 839922192
      %v359 = vunpack.c.0.s8 %v358
      %v360 = vlaneseq
      %v361 = vshrl.u32 %v360, 7
      %v362 = vsub.s32 %v359, %v361
      %v363 = vrot.slane %v355, %v362
      %v365 = vmul.f32 %v171, %v363
      %366 = vst [vmem:[%s170] sm:$0xff] %v365
      %p367 = scmp.lt.s32.totalorder %s14, 1
      %s368 = scalar_select %p367, %s14, 1
      %s369 = smul.addr %s368, 2
      %s370 = smul.addr %s369, 4
      %s371 = scalar_lea.vmem %s3, %s370
      // Predicated region
      $region33: #{se_module.1} parent=31 // pred_check
        %p372 = pneg %p100
      $region34: #{se_module.1} parent=31 // pred_check_branch
        %374 = sbr.rel (%p372) target = $region36
      $region35: #{se_module.1} parent=31 // pred_region
        _
      $region36: #{se_module.1} parent=31 // pred_fallthru
        _
    $region32: #{se_module.1} parent=5 // pred_fallthru
      _
    %p375 = scmp.le.s32.totalorder 2, %s9
    // Predicated region
    $region37: #{se_module.1} parent=5 // pred_check
      %p376 = pneg %p375
    $region38: #{se_module.1} parent=5 // pred_check_branch
      %378 = sbr.rel (%p376) target = $region40
    $region39: #{se_module.1} parent=5 // pred_region
      %s379 = ssub.s32 %s9, 2
      // Predicated region
      $region41: #{se_module.1} parent=39 // pred_check
        %p380 = pneg %p106
      $region42: #{se_module.1} parent=39 // pred_check_branch
        %382 = sbr.rel (%p380) target = $region44
      $region43: #{se_module.1} parent=39 // pred_region
        %p383 = scmp.lt.s32.totalorder %s15, 1
        %s384 = scalar_select %p383, %s15, 1
        %s385 = smul.addr %s384, 2
        %s386 = smul.addr %s385, 4
        %s387 = scalar_lea.vmem %s3, %s386
      $region44: #{se_module.1} parent=39 // pred_fallthru
        _
    $region40: #{se_module.1} parent=5 // pred_fallthru
      _
  $region6: #{se_module.1} parent=0 // loop_footer
    %s13 = sadd.s32 1, %s9
  $region7: #{se_module.1} parent=0 // loop_footer_branch
    %8 = sbr.rel target = $region3
  $region8: #{se_module.1} parent=0 // loop_exit
    _

</llo_original>
